<compile_context>
chip_gen: v6e
topology: v6e:2x2x1
jax: 0.10.0
libtpu: 0.0.40
codegen_flags: <defaults>
</compile_context>

<pallas_src>
import functools

import jax
import jax.numpy as jnp
import numpy as np
from jax import lax
from jax.experimental import pallas as pl
from jax.experimental.pallas import tpu as pltpu


def _round_up(x, m):
    return (x + m - 1) // m * m


def _make_tap_masks(n, hp, wp):
    """Static (9, n*hp*wp) f32 validity masks for the 9 taps of a 3x3 pad=1 conv.

    Lane index m flattens (image, row, col) as m = img*hp*wp + row*wp + col, so
    a lane shift by ddy*wp + ddx lands on the correct neighbour exactly when
    that neighbour lies inside the same image; the mask zeroes image-border and
    batch-boundary crossings (this implements the zero padding).
    """
    m = n * hp * wp
    lane = np.arange(m)
    yy = (lane // wp) % hp
    xx = lane % wp
    rows = []
    for ddy in (-1, 0, 1):
        for ddx in (-1, 0, 1):
            ok = ((yy + ddy >= 0) & (yy + ddy < hp) &
                  (xx + ddx >= 0) & (xx + ddx < wp))
            rows.append(ok.astype(np.float32))
    return jnp.asarray(np.stack(rows, axis=0))


# ----------------------------------------------------------------------------
# Fused kernel: BN-shift + conv3x3+ReLU + conv3x3+ReLU, all in (C, M) layout
# ----------------------------------------------------------------------------
def _fused_convblock_kernel(x_ref, shift_ref, mask_ref, w1t_ref, b1_ref,
                            w2t_ref, b2_ref, o_ref, *, wp):
    # x_ref    : (Cin_p, M)        pooled activation, channel-major, M on lanes
    # shift_ref: (Cin_p, 1)        per-channel BN shift/scale (scale folded in w1t)
    # mask_ref : (9, M)            tap validity masks (1.0 inside, 0.0 at halo)
    # w1t_ref  : (nhid_p, 9*Cin_p) conv1 im2col weights^T, col = (ky*3+kx)*Cin_p+ci
    # b1_ref   : (nhid_p, 1)
    # w2t_ref  : (nOp, 9*nhid_p)   conv2 im2col weights^T
    # b2_ref   : (nOp, 1)
    # o_ref    : (nOp, M)          lane-dense output
    m = x_ref.shape[1]

    def im2col(v):
        # v: (C, M) -> (9*C, M).  Tap (ddy, ddx) is a lane rotation by
        # ddy*wp + ddx (XLU, no relayout) followed by a mask multiply that
        # zeroes out-of-image positions (zero padding + batch separation).
        cols = []
        k = 0
        for ddy in (-1, 0, 1):
            for ddx in (-1, 0, 1):
                if ddy == 0 and ddx == 0:
                    cols.append(v)                       # centre tap: always valid
                else:
                    off = ddy * wp + ddx                 # static lane offset
                    shifted = pltpu.roll(v, (-off) % m, axis=1)
                    cols.append(shifted * mask_ref[k:k + 1, :])
                k += 1
        return jnp.concatenate(cols, axis=0)             # sublane-aligned concat

    # BatchNorm apply: scale already folded into w1t, only the shift remains.
    x_bn = x_ref[...] + shift_ref[...]

    # conv1 (3x3, pad=1): ONE MXU matmul with 128-wide result rows, fused
    # bias + ReLU; the (nhid_p, M) activation never leaves vregs/VMEM.
    h = jnp.dot(w1t_ref[...], im2col(x_bn), preferred_element_type=jnp.float32)
    h = jnp.maximum(h + b1_ref[...], 0.0)

    # conv2 (3x3, pad=1): same structure, lane-dense store straight to o_ref.
    y = jnp.dot(w2t_ref[...], im2col(h), preferred_element_type=jnp.float32)
    o_ref[...] = jnp.maximum(y + b2_ref[...], 0.0).astype(o_ref.dtype)


def fused_conv_block(x_cm, shift_s, masks, w1t, b1, w2t, b2, *, wp):
    """x_cm: (Cin_p, M) channel-major pooled activation; returns (nOp, M)."""
    cin_p, m = x_cm.shape
    nhid_p = w1t.shape[0]
    nop = w2t.shape[0]
    kernel = functools.partial(_fused_convblock_kernel, wp=wp)
    return pl.pallas_call(
        kernel,
        out_shape=jax.ShapeDtypeStruct((nop, m), jnp.float32),
        grid_spec=pltpu.PrefetchScalarGridSpec(
            num_scalar_prefetch=0,
            grid=(1,),
            in_specs=[
                pl.BlockSpec((cin_p, m), lambda i: (0, 0)),
                pl.BlockSpec((cin_p, 1), lambda i: (0, 0)),
                pl.BlockSpec((9, m), lambda i: (0, 0)),
                pl.BlockSpec((nhid_p, 9 * cin_p), lambda i: (0, 0)),
                pl.BlockSpec((nhid_p, 1), lambda i: (0, 0)),
                pl.BlockSpec((nop, 9 * nhid_p), lambda i: (0, 0)),
                pl.BlockSpec((nop, 1), lambda i: (0, 0)),
            ],
            out_specs=pl.BlockSpec((nop, m), lambda i: (0, 0)),
        ),
        compiler_params=pltpu.CompilerParams(
            dimension_semantics=("arbitrary",)),
    )(x_cm, shift_s, masks, w1t, b1, w2t, b2)


# ----------------------------------------------------------------------------
# convBlock forward (twod=True, pool=True, ker=3, padding=1, pooling=2)
# ----------------------------------------------------------------------------
def conv_block_forward(x_nchw, params, pooling=2, eps=1e-5):
    N, C, H, W = x_nchw.shape
    Hp, Wp = H // pooling, W // pooling
    M = N * Hp * Wp
    cin_p = params["w1t"].shape[1] // 9

    # AvgPool2d(2) in NCHW first, then transpose only the pooled tensor into
    # the kernel's channel-major layout (M = N*Hp*Wp on the lane axis).
    x = x_nchw.reshape(N, C, Hp, pooling, Wp, pooling).mean(axis=(3, 5))
    x_cm = x.transpose(1, 0, 2, 3).reshape(C, M)

    # Training-mode BatchNorm2d batch statistics (biased variance), folded to
    # per-channel scale/shift.
    mean = x_cm.mean(axis=1)
    var = ((x_cm - mean[:, None]) ** 2).mean(axis=1)
    scale = params["bn_gamma"] * lax.rsqrt(var + eps)
    shift = params["bn_beta"] - mean * scale

    # Fold the BN scale into conv1's im2col weight columns.  Because the zero
    # padding is applied after BN, the leftover per-channel term stays attached
    # to x inside the kernel and equals shift/scale (scale != 0 here: gamma=1).
    scale_p = jnp.pad(scale, (0, cin_p - C), constant_values=1.0)
    w1t = params["w1t"] * jnp.tile(scale_p, 9)[None, :]
    shift_s = jnp.pad(shift / scale, (0, cin_p - C)).reshape(cin_p, 1)

    # Pad the input channel axis to the sublane multiple used by the weights.
    x_cm = jnp.pad(x_cm, ((0, cin_p - C), (0, 0)))

    masks = _make_tap_masks(N, Hp, Wp)                    # static, (9, M) f32

    y = fused_conv_block(x_cm, shift_s, masks, w1t, params["b1p"],
                         params["w2t"], params["b2p"], wp=Wp)   # (nOp, M)

    nOp = params["w2t"].shape[0]
    # cheap glue: lane-dense kernel output back to PyTorch NCHW
    return y.reshape(nOp, N, Hp, Wp).transpose(1, 0, 2, 3)


# ----------------------------------------------------------------------------
# Deterministic parameter init (shapes follow nn.Conv2d / nn.BatchNorm2d)
# ----------------------------------------------------------------------------
def init_params(key, inCh, nhid, nOp, ker=3):
    k1, k2, k3, k4 = jax.random.split(key, 4)
    fan1 = inCh * ker * ker
    fan2 = nhid * ker * ker
    # PyTorch Conv2d weight layout (Cout, Cin, kh, kw)
    w1 = jax.random.uniform(k1, (nhid, inCh, ker, ker), jnp.float32,
                            -1.0, 1.0) / jnp.sqrt(fan1)
    w2 = jax.random.uniform(k2, (nOp, nhid, ker, ker), jnp.float32,
                            -1.0, 1.0) / jnp.sqrt(fan2)
    b1 = jax.random.uniform(k3, (nhid,), jnp.float32, -1.0, 1.0) / jnp.sqrt(fan1)
    b2 = jax.random.uniform(k4, (nOp,), jnp.float32, -1.0, 1.0) / jnp.sqrt(fan2)

    cin_p = _round_up(inCh, 8)
    nhid_p = _round_up(nhid, 8)

    # im2col-transposed weights in the kernel's channel-major orientation, with
    # both channel axes padded to sublane multiples (zero weights / zero bias).
    w1k = jnp.pad(jnp.transpose(w1, (2, 3, 1, 0)),        # (kh, kw, Cin, Cout)
                  ((0, 0), (0, 0), (0, cin_p - inCh), (0, nhid_p - nhid)))
    w1t = w1k.reshape(ker * ker * cin_p, nhid_p).T        # (nhid_p, 9*cin_p)
    w2k = jnp.pad(jnp.transpose(w2, (2, 3, 1, 0)),        # (kh, kw, nhid, nOp)
                  ((0, 0), (0, 0), (0, nhid_p - nhid), (0, 0)))
    w2t = w2k.reshape(ker * ker * nhid_p, nOp).T          # (nOp, 9*nhid_p)

    return {
        "w1": w1, "w2": w2, "b1": b1, "b2": b2,           # raw, for the reference
        "w1t": w1t, "b1p": jnp.pad(b1, (0, nhid_p - nhid)).reshape(nhid_p, 1),
        "w2t": w2t, "b2p": b2.reshape(nOp, 1),
        "bn_gamma": jnp.ones((inCh,), jnp.float32),
        "bn_beta": jnp.zeros((inCh,), jnp.float32),
    }


# ----------------------------------------------------------------------------
# Pure-JAX reference (for correctness verification)
# ----------------------------------------------------------------------------
def reference_forward(x_nchw, params, pooling=2, eps=1e-5):
    N, C, H, W = x_nchw.shape
    x = x_nchw.reshape(N, C, H // pooling, pooling, W // pooling, pooling)
    x = x.mean(axis=(3, 5))
    mean = x.mean(axis=(0, 2, 3), keepdims=True)
    var = ((x - mean) ** 2).mean(axis=(0, 2, 3), keepdims=True)  # biased var
    g = params["bn_gamma"].reshape(1, C, 1, 1)
    b = params["bn_beta"].reshape(1, C, 1, 1)
    x = g * (x - mean) * lax.rsqrt(var + eps) + b

    def conv(x, w, bias):
        y = lax.conv_general_dilated(
            x, w, window_strides=(1, 1), padding=((1, 1), (1, 1)),
            dimension_numbers=("NCHW", "OIHW", "NCHW"))
        return jnp.maximum(y + bias.reshape(1, -1, 1, 1), 0.0)

    x = conv(x, params["w1"], params["b1"])
    x = conv(x, params["w2"], params["b2"])
    return x


if __name__ == "__main__":
    # small shapes consistent with the module: NCHW input
    N, inCh, H, W = 2, 4, 16, 16
    nhid, nOp = 8, 4

    key = jax.random.PRNGKey(0)
    kx, kp = jax.random.split(key)
    x = jax.random.normal(kx, (N, inCh, H, W), dtype=jnp.float32)
    params = init_params(kp, inCh, nhid, nOp)

    fwd = jax.jit(functools.partial(conv_block_forward, params=params))
    out = jax.block_until_ready(fwd(x))

    ref = jax.block_until_ready(reference_forward(x, params))
    assert out.shape == (N, nOp, H // 2, W // 2), out.shape
    max_err = float(jnp.max(jnp.abs(out - ref)))
    assert jnp.allclose(out, ref, atol=1e-4, rtol=1e-4), max_err

    print("KERNEL_OK")
</pallas_src>

<mosaic_0001>
module attributes {stable_mosaic.version = 11 : i64} {
  func.func @_fused_convblock_kernel(%arg0: i32, %arg1: memref<8x128xf32, #tpu.memory_space<vmem>>, %arg2: memref<8x1xf32, #tpu.memory_space<vmem>>, %arg3: memref<9x128xf32, #tpu.memory_space<vmem>>, %arg4: memref<8x72xf32, #tpu.memory_space<vmem>>, %arg5: memref<8x1xf32, #tpu.memory_space<vmem>>, %arg6: memref<4x72xf32, #tpu.memory_space<vmem>>, %arg7: memref<4x1xf32, #tpu.memory_space<vmem>>, %arg8: memref<4x128xf32, #tpu.memory_space<vmem>>) attributes {dimension_semantics = [#tpu.dimension_semantics<arbitrary>], iteration_bounds = array<i64: 1>, scalar_prefetch = 0 : i64, scratch_operands = 0 : i64, tpu.core_type = #tpu.core_type<tc>, window_params = [{pipeline_mode = #tpu.pipeline_mode<synchronous>, transform_indices = @transform_0, window_bounds = array<i64: 8, 128>}, {pipeline_mode = #tpu.pipeline_mode<synchronous>, transform_indices = @transform_1, window_bounds = array<i64: 8, 1>}, {pipeline_mode = #tpu.pipeline_mode<synchronous>, transform_indices = @transform_2, window_bounds = array<i64: 9, 128>}, {pipeline_mode = #tpu.pipeline_mode<synchronous>, transform_indices = @transform_3, window_bounds = array<i64: 8, 72>}, {pipeline_mode = #tpu.pipeline_mode<synchronous>, transform_indices = @transform_4, window_bounds = array<i64: 8, 1>}, {pipeline_mode = #tpu.pipeline_mode<synchronous>, transform_indices = @transform_5, window_bounds = array<i64: 4, 72>}, {pipeline_mode = #tpu.pipeline_mode<synchronous>, transform_indices = @transform_6, window_bounds = array<i64: 4, 1>}, {pipeline_mode = #tpu.pipeline_mode<synchronous>, transform_indices = @transform_7, window_bounds = array<i64: 4, 128>}]} {
    %c0 = arith.constant 0 : index
    %c0_0 = arith.constant 0 : index
    %0 = vector.load %arg1[%c0, %c0_0] : memref<8x128xf32, #tpu.memory_space<vmem>>, vector<8x128xf32>
    %c0_1 = arith.constant 0 : index
    %c0_2 = arith.constant 0 : index
    %1 = vector.load %arg2[%c0_1, %c0_2] : memref<8x1xf32, #tpu.memory_space<vmem>>, vector<8x1xf32>
    %2 = vector.broadcast %1 : vector<8x1xf32> to vector<8x128xf32>
    %3 = arith.addf %0, %2 : vector<8x128xf32>
    %c0_3 = arith.constant 0 : index
    %c0_4 = arith.constant 0 : index
    %4 = vector.load %arg4[%c0_3, %c0_4] : memref<8x72xf32, #tpu.memory_space<vmem>>, vector<8x72xf32>
    %c9_i32 = arith.constant 9 : i32
    %5 = tpu.dynamic_rotate %3 by %c9_i32 dim 1 : vector<8x128xf32>, i32 -> vector<8x128xf32>
    %c0_5 = arith.constant 0 : index
    %c0_6 = arith.constant 0 : index
    %6 = vector.load %arg3[%c0_5, %c0_6] : memref<9x128xf32, #tpu.memory_space<vmem>>, vector<1x128xf32>
    %7 = vector.broadcast %6 : vector<1x128xf32> to vector<8x128xf32>
    %8 = arith.mulf %5, %7 : vector<8x128xf32>
    %c8_i32 = arith.constant 8 : i32
    %9 = tpu.dynamic_rotate %3 by %c8_i32 dim 1 : vector<8x128xf32>, i32 -> vector<8x128xf32>
    %c1 = arith.constant 1 : index
    %c0_7 = arith.constant 0 : index
    %10 = vector.load %arg3[%c1, %c0_7] : memref<9x128xf32, #tpu.memory_space<vmem>>, vector<1x128xf32>
    %11 = vector.broadcast %10 : vector<1x128xf32> to vector<8x128xf32>
    %12 = arith.mulf %9, %11 : vector<8x128xf32>
    %c7_i32 = arith.constant 7 : i32
    %13 = tpu.dynamic_rotate %3 by %c7_i32 dim 1 : vector<8x128xf32>, i32 -> vector<8x128xf32>
    %c2 = arith.constant 2 : index
    %c0_8 = arith.constant 0 : index
    %14 = vector.load %arg3[%c2, %c0_8] : memref<9x128xf32, #tpu.memory_space<vmem>>, vector<1x128xf32>
    %15 = vector.broadcast %14 : vector<1x128xf32> to vector<8x128xf32>
    %16 = arith.mulf %13, %15 : vector<8x128xf32>
    %c1_i32 = arith.constant 1 : i32
    %17 = tpu.dynamic_rotate %3 by %c1_i32 dim 1 : vector<8x128xf32>, i32 -> vector<8x128xf32>
    %c3 = arith.constant 3 : index
    %c0_9 = arith.constant 0 : index
    %18 = vector.load %arg3[%c3, %c0_9] : memref<9x128xf32, #tpu.memory_space<vmem>>, vector<1x128xf32>
    %19 = vector.broadcast %18 : vector<1x128xf32> to vector<8x128xf32>
    %20 = arith.mulf %17, %19 : vector<8x128xf32>
    %c127_i32 = arith.constant 127 : i32
    %21 = tpu.dynamic_rotate %3 by %c127_i32 dim 1 : vector<8x128xf32>, i32 -> vector<8x128xf32>
    %c5 = arith.constant 5 : index
    %c0_10 = arith.constant 0 : index
    %22 = vector.load %arg3[%c5, %c0_10] : memref<9x128xf32, #tpu.memory_space<vmem>>, vector<1x128xf32>
    %23 = vector.broadcast %22 : vector<1x128xf32> to vector<8x128xf32>
    %24 = arith.mulf %21, %23 : vector<8x128xf32>
    %c121_i32 = arith.constant 121 : i32
    %25 = tpu.dynamic_rotate %3 by %c121_i32 dim 1 : vector<8x128xf32>, i32 -> vector<8x128xf32>
    %c6 = arith.constant 6 : index
    %c0_11 = arith.constant 0 : index
    %26 = vector.load %arg3[%c6, %c0_11] : memref<9x128xf32, #tpu.memory_space<vmem>>, vector<1x128xf32>
    %27 = vector.broadcast %26 : vector<1x128xf32> to vector<8x128xf32>
    %28 = arith.mulf %25, %27 : vector<8x128xf32>
    %c120_i32 = arith.constant 120 : i32
    %29 = tpu.dynamic_rotate %3 by %c120_i32 dim 1 : vector<8x128xf32>, i32 -> vector<8x128xf32>
    %c7 = arith.constant 7 : index
    %c0_12 = arith.constant 0 : index
    %30 = vector.load %arg3[%c7, %c0_12] : memref<9x128xf32, #tpu.memory_space<vmem>>, vector<1x128xf32>
    %31 = vector.broadcast %30 : vector<1x128xf32> to vector<8x128xf32>
    %32 = arith.mulf %29, %31 : vector<8x128xf32>
    %c119_i32 = arith.constant 119 : i32
    %33 = tpu.dynamic_rotate %3 by %c119_i32 dim 1 : vector<8x128xf32>, i32 -> vector<8x128xf32>
    %c8 = arith.constant 8 : index
    %c0_13 = arith.constant 0 : index
    %34 = vector.load %arg3[%c8, %c0_13] : memref<9x128xf32, #tpu.memory_space<vmem>>, vector<1x128xf32>
    %35 = vector.broadcast %34 : vector<1x128xf32> to vector<8x128xf32>
    %36 = arith.mulf %33, %35 : vector<8x128xf32>
    %37 = tpu.concatenate %8, %12, %16, %20, %3, %24, %28, %32, %36 in 0 : vector<8x128xf32>, vector<8x128xf32>, vector<8x128xf32>, vector<8x128xf32>, vector<8x128xf32>, vector<8x128xf32>, vector<8x128xf32>, vector<8x128xf32>, vector<8x128xf32> -> vector<72x128xf32>
    %cst = arith.constant dense<0.000000e+00> : vector<8x128xf32>
    %38 = tpu.matmul %4, %37, %cst {dimension_numbers = #tpu.dot_dimension_numbers<[1], [0], [0], [1], [0, 0, 1, 1], [], []>} : vector<8x72xf32>, vector<72x128xf32>, vector<8x128xf32> -> vector<8x128xf32>
    %c0_14 = arith.constant 0 : index
    %c0_15 = arith.constant 0 : index
    %39 = vector.load %arg5[%c0_14, %c0_15] : memref<8x1xf32, #tpu.memory_space<vmem>>, vector<8x1xf32>
    %40 = vector.broadcast %39 : vector<8x1xf32> to vector<8x128xf32>
    %41 = arith.addf %38, %40 : vector<8x128xf32>
    %cst_16 = arith.constant 0.000000e+00 : f32
    %42 = vector.broadcast %cst_16 : f32 to vector<8x128xf32>
    %43 = arith.maximumf %41, %42 : vector<8x128xf32>
    %c0_17 = arith.constant 0 : index
    %c0_18 = arith.constant 0 : index
    %44 = vector.load %arg6[%c0_17, %c0_18] : memref<4x72xf32, #tpu.memory_space<vmem>>, vector<4x72xf32>
    %c9_i32_19 = arith.constant 9 : i32
    %45 = tpu.dynamic_rotate %43 by %c9_i32_19 dim 1 : vector<8x128xf32>, i32 -> vector<8x128xf32>
    %c0_20 = arith.constant 0 : index
    %c0_21 = arith.constant 0 : index
    %46 = vector.load %arg3[%c0_20, %c0_21] : memref<9x128xf32, #tpu.memory_space<vmem>>, vector<1x128xf32>
    %47 = vector.broadcast %46 : vector<1x128xf32> to vector<8x128xf32>
    %48 = arith.mulf %45, %47 : vector<8x128xf32>
    %c8_i32_22 = arith.constant 8 : i32
    %49 = tpu.dynamic_rotate %43 by %c8_i32_22 dim 1 : vector<8x128xf32>, i32 -> vector<8x128xf32>
    %c1_23 = arith.constant 1 : index
    %c0_24 = arith.constant 0 : index
    %50 = vector.load %arg3[%c1_23, %c0_24] : memref<9x128xf32, #tpu.memory_space<vmem>>, vector<1x128xf32>
    %51 = vector.broadcast %50 : vector<1x128xf32> to vector<8x128xf32>
    %52 = arith.mulf %49, %51 : vector<8x128xf32>
    %c7_i32_25 = arith.constant 7 : i32
    %53 = tpu.dynamic_rotate %43 by %c7_i32_25 dim 1 : vector<8x128xf32>, i32 -> vector<8x128xf32>
    %c2_26 = arith.constant 2 : index
    %c0_27 = arith.constant 0 : index
    %54 = vector.load %arg3[%c2_26, %c0_27] : memref<9x128xf32, #tpu.memory_space<vmem>>, vector<1x128xf32>
    %55 = vector.broadcast %54 : vector<1x128xf32> to vector<8x128xf32>
    %56 = arith.mulf %53, %55 : vector<8x128xf32>
    %c1_i32_28 = arith.constant 1 : i32
    %57 = tpu.dynamic_rotate %43 by %c1_i32_28 dim 1 : vector<8x128xf32>, i32 -> vector<8x128xf32>
    %c3_29 = arith.constant 3 : index
    %c0_30 = arith.constant 0 : index
    %58 = vector.load %arg3[%c3_29, %c0_30] : memref<9x128xf32, #tpu.memory_space<vmem>>, vector<1x128xf32>
    %59 = vector.broadcast %58 : vector<1x128xf32> to vector<8x128xf32>
    %60 = arith.mulf %57, %59 : vector<8x128xf32>
    %c127_i32_31 = arith.constant 127 : i32
    %61 = tpu.dynamic_rotate %43 by %c127_i32_31 dim 1 : vector<8x128xf32>, i32 -> vector<8x128xf32>
    %c5_32 = arith.constant 5 : index
    %c0_33 = arith.constant 0 : index
    %62 = vector.load %arg3[%c5_32, %c0_33] : memref<9x128xf32, #tpu.memory_space<vmem>>, vector<1x128xf32>
    %63 = vector.broadcast %62 : vector<1x128xf32> to vector<8x128xf32>
    %64 = arith.mulf %61, %63 : vector<8x128xf32>
    %c121_i32_34 = arith.constant 121 : i32
    %65 = tpu.dynamic_rotate %43 by %c121_i32_34 dim 1 : vector<8x128xf32>, i32 -> vector<8x128xf32>
    %c6_35 = arith.constant 6 : index
    %c0_36 = arith.constant 0 : index
    %66 = vector.load %arg3[%c6_35, %c0_36] : memref<9x128xf32, #tpu.memory_space<vmem>>, vector<1x128xf32>
    %67 = vector.broadcast %66 : vector<1x128xf32> to vector<8x128xf32>
    %68 = arith.mulf %65, %67 : vector<8x128xf32>
    %c120_i32_37 = arith.constant 120 : i32
    %69 = tpu.dynamic_rotate %43 by %c120_i32_37 dim 1 : vector<8x128xf32>, i32 -> vector<8x128xf32>
    %c7_38 = arith.constant 7 : index
    %c0_39 = arith.constant 0 : index
    %70 = vector.load %arg3[%c7_38, %c0_39] : memref<9x128xf32, #tpu.memory_space<vmem>>, vector<1x128xf32>
    %71 = vector.broadcast %70 : vector<1x128xf32> to vector<8x128xf32>
    %72 = arith.mulf %69, %71 : vector<8x128xf32>
    %c119_i32_40 = arith.constant 119 : i32
    %73 = tpu.dynamic_rotate %43 by %c119_i32_40 dim 1 : vector<8x128xf32>, i32 -> vector<8x128xf32>
    %c8_41 = arith.constant 8 : index
    %c0_42 = arith.constant 0 : index
    %74 = vector.load %arg3[%c8_41, %c0_42] : memref<9x128xf32, #tpu.memory_space<vmem>>, vector<1x128xf32>
    %75 = vector.broadcast %74 : vector<1x128xf32> to vector<8x128xf32>
    %76 = arith.mulf %73, %75 : vector<8x128xf32>
    %77 = tpu.concatenate %48, %52, %56, %60, %43, %64, %68, %72, %76 in 0 : vector<8x128xf32>, vector<8x128xf32>, vector<8x128xf32>, vector<8x128xf32>, vector<8x128xf32>, vector<8x128xf32>, vector<8x128xf32>, vector<8x128xf32>, vector<8x128xf32> -> vector<72x128xf32>
    %cst_43 = arith.constant dense<0.000000e+00> : vector<4x128xf32>
    %78 = tpu.matmul %44, %77, %cst_43 {dimension_numbers = #tpu.dot_dimension_numbers<[1], [0], [0], [1], [0, 0, 1, 1], [], []>} : vector<4x72xf32>, vector<72x128xf32>, vector<4x128xf32> -> vector<4x128xf32>
    %c0_44 = arith.constant 0 : index
    %c0_45 = arith.constant 0 : index
    %79 = vector.load %arg7[%c0_44, %c0_45] : memref<4x1xf32, #tpu.memory_space<vmem>>, vector<4x1xf32>
    %80 = vector.broadcast %79 : vector<4x1xf32> to vector<4x128xf32>
    %81 = arith.addf %78, %80 : vector<4x128xf32>
    %cst_46 = arith.constant 0.000000e+00 : f32
    %82 = vector.broadcast %cst_46 : f32 to vector<4x128xf32>
    %83 = arith.maximumf %81, %82 : vector<4x128xf32>
    %c0_47 = arith.constant 0 : index
    %c0_48 = arith.constant 0 : index
    %84 = vector.load %arg8[%c0_47, %c0_48] : memref<4x128xf32, #tpu.memory_space<vmem>>, vector<4x128xf32>
    tpu.vector_store %arg8[%c0_47, %c0_48], %83 {strides = array<i32>} : memref<4x128xf32, #tpu.memory_space<vmem>>, vector<4x128xf32>,
    return
  }
  func.func @transform_0(%arg0: i32) -> (i32, i32) {
    %c0_i32 = arith.constant 0 : i32
    %c0_i32_0 = arith.constant 0 : i32
    %c0_i32_1 = arith.constant 0 : i32
    return %c0_i32, %c0_i32_0 : i32, i32
  }
  func.func @transform_1(%arg0: i32) -> (i32, i32) {
    %c0_i32 = arith.constant 0 : i32
    %c0_i32_0 = arith.constant 0 : i32
    %c0_i32_1 = arith.constant 0 : i32
    return %c0_i32, %c0_i32_0 : i32, i32
  }
  func.func @transform_2(%arg0: i32) -> (i32, i32) {
    %c0_i32 = arith.constant 0 : i32
    %c0_i32_0 = arith.constant 0 : i32
    %c0_i32_1 = arith.constant 0 : i32
    return %c0_i32, %c0_i32_0 : i32, i32
  }
  func.func @transform_3(%arg0: i32) -> (i32, i32) {
    %c0_i32 = arith.constant 0 : i32
    %c0_i32_0 = arith.constant 0 : i32
    %c0_i32_1 = arith.constant 0 : i32
    return %c0_i32, %c0_i32_0 : i32, i32
  }
  func.func @transform_4(%arg0: i32) -> (i32, i32) {
    %c0_i32 = arith.constant 0 : i32
    %c0_i32_0 = arith.constant 0 : i32
    %c0_i32_1 = arith.constant 0 : i32
    return %c0_i32, %c0_i32_0 : i32, i32
  }
  func.func @transform_5(%arg0: i32) -> (i32, i32) {
    %c0_i32 = arith.constant 0 : i32
    %c0_i32_0 = arith.constant 0 : i32
    %c0_i32_1 = arith.constant 0 : i32
    return %c0_i32, %c0_i32_0 : i32, i32
  }
  func.func @transform_6(%arg0: i32) -> (i32, i32) {
    %c0_i32 = arith.constant 0 : i32
    %c0_i32_0 = arith.constant 0 : i32
    %c0_i32_1 = arith.constant 0 : i32
    return %c0_i32, %c0_i32_0 : i32, i32
  }
  func.func @transform_7(%arg0: i32) -> (i32, i32) {
    %c0_i32 = arith.constant 0 : i32
    %c0_i32_0 = arith.constant 0 : i32
    %c0_i32_1 = arith.constant 0 : i32
    return %c0_i32, %c0_i32_0 : i32, i32
  }
}

</mosaic_0001>

<llo_original>
// kernel: tile.8
$region0: #{tile.8}
  #allocation0 [shape = 's32[1]{0}', space=sflag, size = 0x4, scoped, tag = 'scoped memory for tile.8']
  %s0 = inlined_call_operand.vmem [shape: f32[8], index: 0, kind: input, shape index: {}]
  %s1 = inlined_call_operand.vmem [shape: f32[9,8], index: 1, kind: output, shape index: {}]
  // Predicated region
  $region2: #{tile.8} parent=0 // pred_check
    _
  $region3: #{tile.8} parent=0 // pred_check_branch
    %3 = sbr.rel (0) target = $region5
  $region4: #{tile.8} parent=0 // pred_region
    _
  $region5: #{tile.8} parent=0 // pred_fallthru
    _
  %v4 = vld [vmem:[%s0] ss:$0 sm:$0xff]
  %5 = vst [vmem:[%s1] sm:$0xff] %v4
  %s6 = scalar_lea.vmem %s1, 8
  %7 = vst [vmem:[%s6] sm:$0xff] %v4

// kernel: mul.7
$region0: #{mul.7}
  %s0 = inlined_call_operand.vmem [shape: f32[9,8], index: 0, kind: input, shape index: {}]
  %s1 = inlined_call_operand.vmem [shape: f32[72], index: 1, kind: output, shape index: {}]
  $region1: #{mul.7} parent=0
    #allocation0 [shape = 'u8[4096]{0}', space=vmem, size = 0x1000, scoped, tag = 'scoped mem for output reshape']
    %v2 = vld [vmem:[%s0] sm:$0x1]
    %vm3 = vcmask 64512
    %4 = vst.msk [vmem:[#allocation0] sm:$0x1] %vm3, %v2
    %s5 = scalar_lea.vmem %s0, 8
    %v6 = vld [vmem:[%s5] sm:$0x1]
    %7 = vrot.lane.b32.xlu0 %v6, 64
    %v8 = vpop.permute.xlu0 %7
    %vm9 = vcmask 589312
    %10 = vst.msk [vmem:[#allocation0] sm:$0x1] %vm9, %v8
    %s11 = scalar_lea.vmem %s0, 7
    %v12 = vld [vmem:[%s11] sm:$0x1]
    %13 = vrot.lane.b32.xlu0 %v12, 56
    %v14 = vpop.permute.xlu0 %13
    %vm15 = vcmask 523712
    %16 = vst.msk [vmem:[#allocation0] sm:$0x1] %vm15, %v14
    %s17 = scalar_lea.vmem %s0, 6
    %v18 = vld [vmem:[%s17] sm:$0x1]
    %19 = vrot.lane.b32.xlu0 %v18, 48
    %v20 = vpop.permute.xlu0 %19
    %vm21 = vcmask 458112
    %22 = vst.msk [vmem:[#allocation0] sm:$0x1] %vm21, %v20
    %s23 = scalar_lea.vmem %s0, 5
    %v24 = vld [vmem:[%s23] sm:$0x1]
    %25 = vrot.lane.b32.xlu0 %v24, 40
    %v26 = vpop.permute.xlu0 %25
    %vm27 = vcmask 392512
    %28 = vst.msk [vmem:[#allocation0] sm:$0x1] %vm27, %v26
    %s29 = scalar_lea.vmem %s0, 4
    %v30 = vld [vmem:[%s29] sm:$0x1]
    %31 = vrot.lane.b32.xlu0 %v30, 32
    %v32 = vpop.permute.xlu0 %31
    %vm33 = vcmask 326912
    %34 = vst.msk [vmem:[#allocation0] sm:$0x1] %vm33, %v32
    %s35 = scalar_lea.vmem %s0, 3
    %v36 = vld [vmem:[%s35] sm:$0x1]
    %37 = vrot.lane.b32.xlu0 %v36, 24
    %v38 = vpop.permute.xlu0 %37
    %vm39 = vcmask 261312
    %40 = vst.msk [vmem:[#allocation0] sm:$0x1] %vm39, %v38
    %s41 = scalar_lea.vmem %s0, 2
    %v42 = vld [vmem:[%s41] sm:$0x1]
    %43 = vrot.lane.b32.xlu0 %v42, 16
    %v44 = vpop.permute.xlu0 %43
    %vm45 = vcmask 195712
    %46 = vst.msk [vmem:[#allocation0] sm:$0x1] %vm45, %v44
    %s47 = scalar_lea.vmem %s0, 1
    %v48 = vld [vmem:[%s47] sm:$0x1]
    %49 = vrot.lane.b32.xlu0 %v48, 8
    %v50 = vpop.permute.xlu0 %49
    %vm51 = vcmask 130112
    %52 = vst.msk [vmem:[#allocation0] sm:$0x1] %vm51, %v50
    %s54 = sshll.u32 1, 1
    %s55 = ssub.s32 %s54, 1
    %v57 = vld [vmem:[#allocation0] sm:%s55]
    %s58 = sshll.u32 1, 1
    %s59 = ssub.s32 %s58, 1
    %60 = vst [vmem:[%s1] sm:%s59] %v57

// kernel: conv_block_forward.1
$region0: #{conv_block_forward.1}
  #allocation0 [shape = 'u32[]', space=smem, size = 0x4, offset = 0x4, fixed_abs, tag = 'smem constant byte address 0x4 - core index']
  #allocation1 [shape = 'u32[144,128]{1,0:T(1,128)}', space=vmem, size = 0x12000, scoped, tag = 'internal scratch']
  %s0 = inlined_call_operand.vmem [shape: f32[8,128], index: 0, kind: input, shape index: {}]
  %s1 = inlined_call_operand.vmem [shape: f32[8,1], index: 1, kind: input, shape index: {}]
  %s2 = inlined_call_operand.vmem [shape: f32[9,128], index: 2, kind: input, shape index: {}]
  %s3 = inlined_call_operand.vmem [shape: f32[8,72], index: 3, kind: input, shape index: {}]
  %s4 = inlined_call_operand.vmem [shape: f32[8,1], index: 4, kind: input, shape index: {}]
  %s5 = inlined_call_operand.vmem [shape: f32[4,72], index: 5, kind: input, shape index: {}]
  %s6 = inlined_call_operand.vmem [shape: f32[4,1], index: 6, kind: input, shape index: {}]
  %s7 = inlined_call_operand.vmem [shape: f32[4,128], index: 7, kind: output, shape index: {}]
  %s8 = sld [smem:[#allocation0]]
  $region38: #{conv_block_forward.1} parent=0
    _
  %s10 = ssub.s32 1, %s8
  %s11 = scalar_select 0, %s10, %s8
  // Predicated region
  $region2: #{conv_block_forward.1} parent=0 // pred_check
    _
  $region3: #{conv_block_forward.1} parent=0 // pred_check_branch
    %13 = sbr.rel (0) target = $region5
  $region4: #{conv_block_forward.1} parent=0 // pred_region
    _
  $region5: #{conv_block_forward.1} parent=0 // pred_fallthru
    _
  // Predicated region
  $region6: #{conv_block_forward.1} parent=0 // pred_check
    _
  $region7: #{conv_block_forward.1} parent=0 // pred_check_branch
    %15 = sbr.rel (0) target = $region9
  $region8: #{conv_block_forward.1} parent=0 // pred_region
    _
  $region9: #{conv_block_forward.1} parent=0 // pred_fallthru
    _
  // Predicated region
  $region10: #{conv_block_forward.1} parent=0 // pred_check
    _
  $region11: #{conv_block_forward.1} parent=0 // pred_check_branch
    %17 = sbr.rel (0) target = $region13
  $region12: #{conv_block_forward.1} parent=0 // pred_region
    _
  $region13: #{conv_block_forward.1} parent=0 // pred_fallthru
    _
  // Predicated region
  $region14: #{conv_block_forward.1} parent=0 // pred_check
    _
  $region15: #{conv_block_forward.1} parent=0 // pred_check_branch
    %19 = sbr.rel (0) target = $region17
  $region16: #{conv_block_forward.1} parent=0 // pred_region
    _
  $region17: #{conv_block_forward.1} parent=0 // pred_fallthru
    _
  // Predicated region
  $region18: #{conv_block_forward.1} parent=0 // pred_check
    _
  $region19: #{conv_block_forward.1} parent=0 // pred_check_branch
    %21 = sbr.rel (0) target = $region21
  $region20: #{conv_block_forward.1} parent=0 // pred_region
    _
  $region21: #{conv_block_forward.1} parent=0 // pred_fallthru
    _
  // Predicated region
  $region22: #{conv_block_forward.1} parent=0 // pred_check
    _
  $region23: #{conv_block_forward.1} parent=0 // pred_check_branch
    %23 = sbr.rel (0) target = $region25
  $region24: #{conv_block_forward.1} parent=0 // pred_region
    _
  $region25: #{conv_block_forward.1} parent=0 // pred_fallthru
    _
  // Predicated region
  $region26: #{conv_block_forward.1} parent=0 // pred_check
    _
  $region27: #{conv_block_forward.1} parent=0 // pred_check_branch
    %25 = sbr.rel (0) target = $region29
  $region28: #{conv_block_forward.1} parent=0 // pred_region
    _
  $region29: #{conv_block_forward.1} parent=0 // pred_fallthru
    _
  %v26 = vld [vmem:[%s0] sm:$0xff]
  %v27 = vld [vmem:[%s1] sm:$0xff]
  %29 = vset.pattern.permute.xlu0 0
  %30 = vperm.xlu0 %29, %v27
  %v31 = vpop.permute.xlu0 %30
  %v33 = vadd.f32 %v26, %v31
  %v34 = vld [vmem:[%s3] sm:$0xff]
  %35 = vrot.lane.b32.xlu0 %v33, 9
  %v36 = vpop.permute.xlu0 %35
  %v37 = vld [vmem:[%s2] sm:$0x1]
  %v38 = vlaneseq
  %v39 = vshrl.u32 %v38, 7
  %v40 = vsub.s32 0, %v39
  %v41 = vrot.slane %v37, %v40
  %v42 = vmul.f32 %v36, %v41
  %43 = vrot.lane.b32.xlu0 %v33, 8
  %v44 = vpop.permute.xlu0 %43
  %v45 = vld [vmem:[%s2 + $0x1] sm:$0x1]
  %v46 = vlaneseq
  %v47 = vshrl.u32 %v46, 7
  %v48 = vsub.s32 0, %v47
  %v49 = vrot.slane %v45, %v48
  %v50 = vmul.f32 %v44, %v49
  %51 = vrot.lane.b32.xlu0 %v33, 7
  %v52 = vpop.permute.xlu0 %51
  %v53 = vld [vmem:[%s2 + $0x2] sm:$0x1]
  %v54 = vlaneseq
  %v55 = vshrl.u32 %v54, 7
  %v56 = vsub.s32 0, %v55
  %v57 = vrot.slane %v53, %v56
  %v58 = vmul.f32 %v52, %v57
  %59 = vrot.lane.b32.xlu0 %v33, 1
  %v60 = vpop.permute.xlu0 %59
  %v61 = vld [vmem:[%s2 + $0x3] sm:$0x1]
  %v62 = vlaneseq
  %v63 = vshrl.u32 %v62, 7
  %v64 = vsub.s32 0, %v63
  %v65 = vrot.slane %v61, %v64
  %v66 = vmul.f32 %v60, %v65
  %67 = vrot.lane.b32.xlu0 %v33, 127
  %v68 = vpop.permute.xlu0 %67
  %v69 = vld [vmem:[%s2 + $0x5] sm:$0x1]
  %v70 = vlaneseq
  %v71 = vshrl.u32 %v70, 7
  %v72 = vsub.s32 0, %v71
  %v73 = vrot.slane %v69, %v72
  %v74 = vmul.f32 %v68, %v73
  %75 = vrot.lane.b32.xlu0 %v33, 121
  %v76 = vpop.permute.xlu0 %75
  %v77 = vld [vmem:[%s2 + $0x6] sm:$0x1]
  %v78 = vlaneseq
  %v79 = vshrl.u32 %v78, 7
  %v80 = vsub.s32 0, %v79
  %v81 = vrot.slane %v77, %v80
  %v82 = vmul.f32 %v76, %v81
  %83 = vrot.lane.b32.xlu0 %v33, 120
  %v84 = vpop.permute.xlu0 %83
  %v85 = vld [vmem:[%s2 + $0x7] sm:$0x1]
  %v86 = vlaneseq
  %v87 = vshrl.u32 %v86, 7
  %v88 = vsub.s32 0, %v87
  %v89 = vrot.slane %v85, %v88
  %v90 = vmul.f32 %v84, %v89
  %91 = vrot.lane.b32.xlu0 %v33, 119
  %v92 = vpop.permute.xlu0 %91
  %v93 = vld [vmem:[%s2 + $0x8] sm:$0x1]
  %v94 = vlaneseq
  %v95 = vshrl.u32 %v94, 7
  %v96 = vsub.s32 0, %v95
  %v97 = vrot.slane %v93, %v96
  %v98 = vmul.f32 %v92, %v97
  %v99 = vld [vmem:[%s4] sm:$0xff]
  %101 = vset.pattern.permute.xlu0 0
  %102 = vperm.xlu0 %101, %v99
  %v103 = vpop.permute.xlu0 %102
  %vm105 = vcmask 588800
  %v107 = vsel %vm105, %v34, 0
  %109 = vmatprep.subr.mxu0 0.0
  %110 = vmatpush1.msra.mxu0 0.0
  %111 = vmatprep.subr.mxu0 0.0
  %112 = vmatpush1.msra.mxu0 0.0
  %113 = vmatprep.subr.mxu0 0.0
  %114 = vmatpush1.msra.mxu0 0.0
  %115 = vmatprep.subr.mxu0 0.0
  %116 = vmatpush1.msra.mxu0 0.0
  %117 = vmatprep.subr.mxu0 0.0
  %118 = vmatpush1.msra.mxu0 0.0
  %119 = vmatprep.subr.mxu0 0.0
  %120 = vmatpush1.msra.mxu0 0.0
  %121 = vmatprep.subr.mxu0 0.0
  %122 = vmatpush1.msra.mxu0 0.0
  %123 = vmatprep.subr.mxu0 0.0
  %124 = vmatpush1.msra.mxu0 %v98
  %125 = vmatprep.subr.mxu0 0.0
  %126 = vmatpush1.msra.mxu0 %v90
  %127 = vmatprep.subr.mxu0 0.0
  %128 = vmatpush1.msra.mxu0 %v82
  %129 = vmatprep.subr.mxu0 0.0
  %130 = vmatpush1.msra.mxu0 %v74
  %131 = vmatprep.subr.mxu0 0.0
  %132 = vmatpush1.msra.mxu0 %v33
  %133 = vmatprep.subr.mxu0 0.0
  %134 = vmatpush1.msra.mxu0 %v66
  %135 = vmatprep.subr.mxu0 0.0
  %136 = vmatpush1.msra.mxu0 %v58
  %137 = vmatprep.subr.mxu0 0.0
  %138 = vmatpush1.msra.mxu0 %v50
  %139 = vmatprep.subr.mxu0 0.0
  %140 = vmatpush1.msra.mxu0 %v42
  %141 = vmatprep.subr.mxu0 0.0
  %142 = vmatpush2.msra.mxu0 0.0
  %143 = vmatprep.subr.mxu0 0.0
  %144 = vmatpush2.msra.mxu0 0.0
  %145 = vmatprep.subr.mxu0 0.0
  %146 = vmatpush2.msra.mxu0 0.0
  %147 = vmatprep.subr.mxu0 0.0
  %148 = vmatpush2.msra.mxu0 0.0
  %149 = vmatprep.subr.mxu0 0.0
  %150 = vmatpush2.msra.mxu0 0.0
  %151 = vmatprep.subr.mxu0 0.0
  %152 = vmatpush2.msra.mxu0 0.0
  %153 = vmatprep.subr.mxu0 0.0
  %154 = vmatpush2.msra.mxu0 0.0
  %155 = vmatprep.subr.mxu0 0.0
  %156 = vmatpush2.msra.mxu0 0.0
  %157 = vmatprep.subr.mxu0 0.0
  %158 = vmatpush2.msra.mxu0 0.0
  %159 = vmatprep.subr.mxu0 0.0
  %160 = vmatpush2.msra.mxu0 0.0
  %161 = vmatprep.subr.mxu0 0.0
  %162 = vmatpush2.msra.mxu0 0.0
  %163 = vmatprep.subr.mxu0 0.0
  %164 = vmatpush2.msra.mxu0 0.0
  %165 = vmatprep.subr.mxu0 0.0
  %166 = vmatpush2.msra.mxu0 0.0
  %167 = vmatprep.subr.mxu0 0.0
  %168 = vmatpush2.msra.mxu0 0.0
  %169 = vmatprep.subr.mxu0 0.0
  %170 = vmatpush2.msra.mxu0 0.0
  %171 = vmatprep.subr.mxu0 0.0
  %172 = vmatpush2.msra.mxu0 0.0
  %173 = vmatprep.mubr.f32.mxu0 0.0
  %174 = vmatmul.mubr.f32.gmra.mxu0 %v107
  %v175 = vpop.f32.mrf.mxu0
  %v176 = vadd.f32 %v103, %v175
  %v177 = vpop.f32.mrf.mxu0
  %178 = vdwg.mxu0
  %v179 = vmax.f32 %v176, 0.0
  %v180 = vld [vmem:[%s5] sm:$0xf]
  %181 = vrot.lane.b32.xlu0 %v179, 9
  %v182 = vpop.permute.xlu0 %181
  %v183 = vmul.f32 %v182, %v41
  %184 = vrot.lane.b32.xlu0 %v179, 8
  %v185 = vpop.permute.xlu0 %184
  %v186 = vmul.f32 %v185, %v49
  %187 = vrot.lane.b32.xlu0 %v179, 7
  %v188 = vpop.permute.xlu0 %187
  %v189 = vmul.f32 %v188, %v57
  %190 = vrot.lane.b32.xlu0 %v179, 1
  %v191 = vpop.permute.xlu0 %190
  %v192 = vmul.f32 %v191, %v65
  %193 = vrot.lane.b32.xlu0 %v179, 127
  %v194 = vpop.permute.xlu0 %193
  %v195 = vmul.f32 %v194, %v73
  %196 = vrot.lane.b32.xlu0 %v179, 121
  %v197 = vpop.permute.xlu0 %196
  %v198 = vmul.f32 %v197, %v81
  %199 = vrot.lane.b32.xlu0 %v179, 120
  %v200 = vpop.permute.xlu0 %199
  %v201 = vmul.f32 %v200, %v89
  %202 = vrot.lane.b32.xlu0 %v179, 119
  %v203 = vpop.permute.xlu0 %202
  %v204 = vmul.f32 %v203, %v97
  %v205 = vld [vmem:[%s6] sm:$0xf]
  %207 = vset.pattern.permute.xlu0 0
  %208 = vperm.xlu0 %207, %v205
  %v209 = vpop.permute.xlu0 %208
  %v212 = vsel %vm105, %v180, 0
  %214 = vmatprep.subr.mxu0 0.0
  %215 = vmatpush1.msra.mxu0 0.0
  %216 = vmatprep.subr.mxu0 0.0
  %217 = vmatpush1.msra.mxu0 0.0
  %218 = vmatprep.subr.mxu0 0.0
  %219 = vmatpush1.msra.mxu0 0.0
  %220 = vmatprep.subr.mxu0 0.0
  %221 = vmatpush1.msra.mxu0 0.0
  %222 = vmatprep.subr.mxu0 0.0
  %223 = vmatpush1.msra.mxu0 0.0
  %224 = vmatprep.subr.mxu0 0.0
  %225 = vmatpush1.msra.mxu0 0.0
  %226 = vmatprep.subr.mxu0 0.0
  %227 = vmatpush1.msra.mxu0 0.0
  %228 = vmatprep.subr.mxu0 0.0
  %229 = vmatpush1.msra.mxu0 %v204
  %230 = vmatprep.subr.mxu0 0.0
  %231 = vmatpush1.msra.mxu0 %v201
  %232 = vmatprep.subr.mxu0 0.0
  %233 = vmatpush1.msra.mxu0 %v198
  %234 = vmatprep.subr.mxu0 0.0
  %235 = vmatpush1.msra.mxu0 %v195
  %236 = vmatprep.subr.mxu0 0.0
  %237 = vmatpush1.msra.mxu0 %v179
  %238 = vmatprep.subr.mxu0 0.0
  %239 = vmatpush1.msra.mxu0 %v192
  %240 = vmatprep.subr.mxu0 0.0
  %241 = vmatpush1.msra.mxu0 %v189
  %242 = vmatprep.subr.mxu0 0.0
  %243 = vmatpush1.msra.mxu0 %v186
  %244 = vmatprep.subr.mxu0 0.0
  %245 = vmatpush1.msra.mxu0 %v183
  %246 = vmatprep.subr.mxu0 0.0
  %247 = vmatpush2.msra.mxu0 0.0
  %248 = vmatprep.subr.mxu0 0.0
  %249 = vmatpush2.msra.mxu0 0.0
  %250 = vmatprep.subr.mxu0 0.0
  %251 = vmatpush2.msra.mxu0 0.0
  %252 = vmatprep.subr.mxu0 0.0
  %253 = vmatpush2.msra.mxu0 0.0
  %254 = vmatprep.subr.mxu0 0.0
  %255 = vmatpush2.msra.mxu0 0.0
  %256 = vmatprep.subr.mxu0 0.0
  %257 = vmatpush2.msra.mxu0 0.0
  %258 = vmatprep.subr.mxu0 0.0
  %259 = vmatpush2.msra.mxu0 0.0
  %260 = vmatprep.subr.mxu0 0.0
  %261 = vmatpush2.msra.mxu0 0.0
  %262 = vmatprep.subr.mxu0 0.0
  %263 = vmatpush2.msra.mxu0 0.0
  %264 = vmatprep.subr.mxu0 0.0
  %265 = vmatpush2.msra.mxu0 0.0
  %266 = vmatprep.subr.mxu0 0.0
  %267 = vmatpush2.msra.mxu0 0.0
  %268 = vmatprep.subr.mxu0 0.0
  %269 = vmatpush2.msra.mxu0 0.0
  %270 = vmatprep.subr.mxu0 0.0
  %271 = vmatpush2.msra.mxu0 0.0
  %272 = vmatprep.subr.mxu0 0.0
  %273 = vmatpush2.msra.mxu0 0.0
  %274 = vmatprep.subr.mxu0 0.0
  %275 = vmatpush2.msra.mxu0 0.0
  %276 = vmatprep.subr.mxu0 0.0
  %277 = vmatpush2.msra.mxu0 0.0
  %278 = vmatprep.mubr.f32.mxu0 0.0
  %279 = vmatmul.mubr.f32.gmra.mxu0 %v212
  %v280 = vpop.f32.mrf.mxu0
  %v281 = vadd.f32 %v209, %v280
  %v282 = vpop.f32.mrf.mxu0
  %283 = vdwg.mxu0
  %v284 = vmax.f32 %v281, 0.0
  %285 = vst [vmem:[%s7] sm:$0xf] %v284
  // Predicated region
  $region30: #{conv_block_forward.1} parent=0 // pred_check
    _
  $region31: #{conv_block_forward.1} parent=0 // pred_check_branch
    %287 = sbr.rel (0) target = $region33
  $region32: #{conv_block_forward.1} parent=0 // pred_region
    _
  $region33: #{conv_block_forward.1} parent=0 // pred_fallthru
    _
  // Predicated region
  $region34: #{conv_block_forward.1} parent=0 // pred_check
    _
  $region35: #{conv_block_forward.1} parent=0 // pred_check_branch
    %289 = sbr.rel (0) target = $region37
  $region36: #{conv_block_forward.1} parent=0 // pred_region
    _
  $region37: #{conv_block_forward.1} parent=0 // pred_fallthru
    _

</llo_original>
